<compile_context>
chip_gen: v5e
topology: v5e:2x2
jax: 0.10.0
libtpu: 0.0.40
codegen_flags: <defaults>
</compile_context>

<pallas_src>
import jax
import jax.numpy as jnp
from jax.experimental import pallas as pl
from jax.experimental.pallas import tpu as pltpu


def _clip_fused_kernel(a_ref, b_ref, labc_ref, labr_ref, cntc_ref, cntr_ref,
                       scale_ref, loss_ref,
                       bnorm_ref, m_col, l_col, row_acc, cross_acc):
    r = pl.program_id(1)                      # row block within the pair
    n_row = pl.num_programs(1)
    n_total = jnp.float32(labr_ref.shape[1])  # full batch size N (static)

    @pl.when(r == 0)
    def _start_pair():
        # Hoisted: normalize the FULL B feature block once per pair and stash
        # it in VMEM in the MXU operand dtype (not redone per row block).
        b32 = b_ref[...].astype(jnp.float32)
        inv_b = jax.lax.rsqrt(
            jnp.maximum(jnp.sum(b32 * b32, axis=-1, keepdims=True), 1e-24))
        bnorm_ref[...] = (b32 * inv_b).astype(bnorm_ref.dtype)
        m_col[...] = jnp.full_like(m_col, -jnp.inf)
        l_col[...] = jnp.zeros_like(l_col)
        row_acc[...] = jnp.zeros_like(row_acc)
        cross_acc[...] = jnp.zeros_like(cross_acc)

    # ---- A row block: f32 elementwise math (v5e-safe), fold logit_scale into
    #      the per-row factor of A, cast operands to the MXU dtype (bf16). ----
    scale = scale_ref[0]
    a32 = a_ref[...].astype(jnp.float32)
    inv_a = jax.lax.rsqrt(
        jnp.maximum(jnp.sum(a32 * a32, axis=-1, keepdims=True), 1e-24))
    a_s = (a32 * (inv_a * scale)).astype(bnorm_ref.dtype)

    # sim = logit_scale * norm(A_blk) @ norm(B).T  (contraction over D, f32 acc)
    sim = jax.lax.dot_general(a_s, bnorm_ref[...], (((1,), (1,)), ((), ())),
                              preferred_element_type=jnp.float32)   # (TM, N)

    # ---- direction a -> b: exact row-wise logsumexp (single exp tile) -------
    m_row = jnp.max(sim, axis=-1, keepdims=True)                    # (TM, 1)
    e = jnp.exp(sim - m_row)                                        # only (TM,N) exp
    lse_row = m_row + jnp.log(jnp.sum(e, axis=-1, keepdims=True))   # (TM, 1)
    # t_rowsum[i] == count[labels[i]] is precomputed (cntc_ref).
    row_acc[...] += jnp.sum(cntc_ref[...] * lse_row, axis=0, keepdims=True)

    # cross term sum_ij T_ij * sim_ij; target tile compared on the fly.
    match = labc_ref[...] == labr_ref[...]                          # (TM, N)
    cross_acc[...] += jnp.sum(
        jnp.sum(jnp.where(match, sim, 0.0), axis=-1, keepdims=True),
        axis=0, keepdims=True)

    # ---- direction b -> a (= sim.T, symmetric targets): online column
    #      logsumexp, REUSING the row exp tile via a clamped rank-1 rescale
    #      exp(m_row_i - m_new_j) = ea_i * eb_j (halves EUP work). -----------
    m_blk = jnp.max(sim, axis=0, keepdims=True)                     # (1, N)
    m_new = jnp.maximum(m_col[...], m_blk)                          # (1, N)
    c_blk = jnp.max(m_row, axis=0, keepdims=True)                   # (1, 1) block max
    ea = jnp.exp(m_row - c_blk)                                     # (TM,1), <= 1
    eb = jnp.exp(jnp.minimum(c_blk - m_new, 60.0))                  # (1, N), clamped
    col_part = jnp.sum(e * ea, axis=0, keepdims=True) * eb          # ~ sum_i exp(sim-m_new)
    l_col[...] = l_col[...] * jnp.exp(m_col[...] - m_new) + col_part
    m_col[...] = m_new

    @pl.when(r == n_row - 1)
    def _finalize_pair():
        # True column sumexp (in its own max frame) is always >= 1, so the
        # floor is a safe guard for pathological dynamic range (> ~60 spread).
        lse_col = m_col[...] + jnp.log(jnp.maximum(l_col[...], 1.0))   # (1, N)
        col_term = jnp.sum(cntr_ref[...] * lse_col, axis=-1, keepdims=True)
        inv_n = 1.0 / n_total
        loss_ab = (row_acc[...] - cross_acc[...]) * inv_n
        loss_ba = (col_term - cross_acc[...]) * inv_n
        loss_ref[...] = loss_ab + loss_ba        # per-pair partial; /6 in wrapper


_TILE_CANDIDATES = (1024, 512, 256, 128, 64, 32, 16, 8)


def _vmem_capacity_bytes():
    try:
        info = pltpu.get_tpu_info()
        return int(getattr(info, "vmem_capacity_bytes", 64 * 1024 * 1024))
    except Exception:
        return 64 * 1024 * 1024   # conservative (v7x) fallback


def _choose_row_tile(n, d, in_bytes, mxu_bytes, budget_bytes):
    """Largest row tile whose estimated VMEM working set fits the budget."""
    fixed = 2 * n * d * in_bytes            # double-buffered B feature block
    fixed += n * d * mxu_bytes              # normalized-B VMEM scratch
    fixed += 16 * n * 4                     # (1,N) column scratches / row inputs
    per_row = 5 * n * 4                     # live (TM,N) f32 temps (sim/exp/mask/...)
    per_row += 2 * d * in_bytes + 4 * d * 4 + 256   # A block buffers + f32 temps
    avail = max(budget_bytes - fixed, 8 * per_row)
    tile = None
    for t in _TILE_CANDIDATES:
        if n % t == 0 and t * per_row <= avail:
            tile = t
            break
    if tile is None:
        tile = next((t for t in _TILE_CANDIDATES if n % t == 0), n)
    return tile, fixed + tile * per_row


def clip_loss(image_features, dna_features, text_features, labels, logit_scale,
              *, mxu_dtype=jnp.bfloat16):
    """JAX equivalent of ClipLoss.forward (world_size=1 defaults), fused kernel."""
    N, D = image_features.shape
    # TODO(synk): callers that already hold a stacked (3, N, D) array can pass it
    #             directly to skip this extra HBM round trip.
    feats = jnp.stack([image_features, dna_features, text_features], axis=0)
    labels = labels.astype(jnp.int32)
    lab_col = labels.reshape(N, 1)
    lab_row = labels.reshape(1, N)

    # Label-match counts (histogram via sort/searchsorted, no (N,N) matrix):
    # cnt[i] = #{j : labels[j] == labels[i]} == row/col sums of the target T.
    sorted_lab = jnp.sort(labels)
    cnt = (jnp.searchsorted(sorted_lab, labels, side="right")
           - jnp.searchsorted(sorted_lab, labels, side="left")).astype(jnp.float32)
    cnt_col = cnt.reshape(N, 1)
    cnt_row = cnt.reshape(1, N)
    scale = jnp.asarray(logit_scale, jnp.float32).reshape(1)

    in_bytes = jnp.dtype(feats.dtype).itemsize
    mxu_bytes = jnp.dtype(mxu_dtype).itemsize
    cap = _vmem_capacity_bytes()
    tm, est_bytes = _choose_row_tile(N, D, in_bytes, mxu_bytes, int(0.75 * cap))
    n_row = N // tm
    vmem_limit = int(min(0.9 * cap, max(est_bytes + (8 << 20), 32 << 20)))

    cost = pl.CostEstimate(
        flops=int(6 * N * N * D + 24 * N * N + 18 * N * D),
        transcendentals=int(3 * N * N + 24 * N),
        bytes_accessed=int(6 * N * D * in_bytes + 16 * N + 64),
    )

    # Pair p selects (A, B) feature indices:
    #   p=0 -> (image, dna), p=1 -> (image, text), p=2 -> (dna, text)
    a_spec = pl.BlockSpec((None, tm, D), lambda p, r: (jnp.maximum(p - 1, 0), r, 0))
    b_spec = pl.BlockSpec((None, N, D), lambda p, r: (jnp.minimum(p + 1, 2), 0, 0))

    out = pl.pallas_call(
        _clip_fused_kernel,
        out_shape=jax.ShapeDtypeStruct((3, 1, 1), jnp.float32),
        grid_spec=pltpu.PrefetchScalarGridSpec(
            num_scalar_prefetch=0,
            grid=(3, n_row),
            in_specs=[
                a_spec,                                          # A row block
                b_spec,                                          # full B features
                pl.BlockSpec((tm, 1), lambda p, r: (r, 0)),      # labels, column block
                pl.BlockSpec((1, N), lambda p, r: (0, 0)),       # labels, full row
                pl.BlockSpec((tm, 1), lambda p, r: (r, 0)),      # match counts, col block
                pl.BlockSpec((1, N), lambda p, r: (0, 0)),       # match counts, full row
                pl.BlockSpec(memory_space=pltpu.SMEM),           # logit_scale scalar
            ],
            out_specs=pl.BlockSpec((None, 1, 1), lambda p, r: (p, 0, 0)),
            scratch_shapes=[
                pltpu.VMEM((N, D), mxu_dtype),     # normalized B (per pair)
                pltpu.VMEM((1, N), jnp.float32),   # m_col (online column max)
                pltpu.VMEM((1, N), jnp.float32),   # l_col (online column sumexp)
                pltpu.VMEM((1, 1), jnp.float32),   # row_acc
                pltpu.VMEM((1, 1), jnp.float32),   # cross_acc
            ],
        ),
        compiler_params=pltpu.CompilerParams(
            dimension_semantics=("parallel", "arbitrary"),   # pair axis -> megacore
            vmem_limit_bytes=vmem_limit),
        cost_estimate=cost,
    )(feats, feats, lab_col, lab_row, cnt_col, cnt_row, scale)

    # Mean of the 12 (double-counted) directed losses == (sum of 6 unique) / 6.
    return jnp.sum(out) * (1.0 / 6.0)


def _clip_loss_ref(image_features, dna_features, text_features, labels, logit_scale):
    """Pure-JAX reference (mirrors the PyTorch 12-term loop) for verification."""
    t = (labels[None, :] == labels[:, None]).astype(jnp.float32)

    def norm(x):
        return x / jnp.maximum(jnp.linalg.norm(x, axis=1, keepdims=True), 1e-12)

    def ce(sim, tgt):
        lse = jax.nn.logsumexp(sim, axis=-1, keepdims=True)
        return jnp.mean(jnp.sum(tgt * (lse - sim), axis=-1))

    feats = [image_features, dna_features, text_features]
    losses = []
    for ia, fa in enumerate(feats):
        for ib, fb in enumerate(feats):
            if ia == ib:
                continue
            a, b = norm(fa), norm(fb)
            losses.append(ce(logit_scale * a @ b.T, t))
            losses.append(ce(logit_scale * b @ a.T, t))
    return sum(losses) / float(len(losses))


if __name__ == "__main__":
    key = jax.random.PRNGKey(0)
    N, D = 8, 32  # small batch / embedding dim
    k1, k2, k3, k4 = jax.random.split(key, 4)
    image_features = jax.random.normal(k1, (N, D), jnp.float32)
    dna_features = jax.random.normal(k2, (N, D), jnp.float32)
    text_features = jax.random.normal(k3, (N, D), jnp.float32)
    labels = jax.random.randint(k4, (N,), 0, 3)
    logit_scale = jnp.float32(14.285714)  # ~ 1 / 0.07, typical CLIP temperature

    ref = _clip_loss_ref(image_features, dna_features, text_features, labels, logit_scale)

    # Performance default: bf16 MXU operands, f32 accumulation.
    loss_bf16 = clip_loss(image_features, dna_features, text_features, labels, logit_scale)
    loss_bf16 = jax.block_until_ready(loss_bf16)
    assert jnp.allclose(loss_bf16, ref, rtol=5e-2, atol=5e-2), (loss_bf16, ref)

    # Bit-careful path: f32 MXU operands must match the reference tightly.
    loss_f32 = clip_loss(image_features, dna_features, text_features, labels,
                         logit_scale, mxu_dtype=jnp.float32)
    loss_f32 = jax.block_until_ready(loss_f32)
    assert jnp.allclose(loss_f32, ref, rtol=1e-3, atol=1e-3), (loss_f32, ref)

    print("KERNEL_OK")
</pallas_src>

<mosaic_0001>
module attributes {stable_mosaic.version = 11 : i64} {
  func.func @_clip_fused_kernel(%arg0: i32, %arg1: i32, %arg2: memref<1x8x32xf32, #tpu.memory_space<vmem>>, %arg3: memref<1x8x32xf32, #tpu.memory_space<vmem>>, %arg4: memref<8x1xi32, #tpu.memory_space<vmem>>, %arg5: memref<1x8xi32, #tpu.memory_space<vmem>>, %arg6: memref<8x1xf32, #tpu.memory_space<vmem>>, %arg7: memref<1x8xf32, #tpu.memory_space<vmem>>, %arg8: memref<1xf32, #tpu.memory_space<smem>>, %arg9: memref<1x1x1xf32, #tpu.memory_space<vmem>>, %arg10: memref<8x32xbf16, #tpu.memory_space<vmem>>, %arg11: memref<1x8xf32, #tpu.memory_space<vmem>>, %arg12: memref<1x8xf32, #tpu.memory_space<vmem>>, %arg13: memref<1x1xf32, #tpu.memory_space<vmem>>, %arg14: memref<1x1xf32, #tpu.memory_space<vmem>>) attributes {dimension_semantics = [#tpu.dimension_semantics<parallel>, #tpu.dimension_semantics<arbitrary>], iteration_bounds = array<i64: 3, 1>, scalar_prefetch = 0 : i64, scratch_operands = 5 : i64, tpu.core_type = #tpu.core_type<tc>, window_params = [{transform_indices = @transform_0, window_bounds = array<i64: 1, 8, 32>}, {transform_indices = @transform_1, window_bounds = array<i64: 1, 8, 32>}, {transform_indices = @transform_2, window_bounds = array<i64: 8, 1>}, {pipeline_mode = #tpu.pipeline_mode<synchronous>, transform_indices = @transform_3, window_bounds = array<i64: 1, 8>}, {transform_indices = @transform_4, window_bounds = array<i64: 8, 1>}, {pipeline_mode = #tpu.pipeline_mode<synchronous>, transform_indices = @transform_5, window_bounds = array<i64: 1, 8>}, {transform_indices = @transform_6, window_bounds = array<i64: 1>}, {transform_indices = @transform_7, window_bounds = array<i64: 1, 1, 1>}]} {
    %c0_i32 = arith.constant 0 : i32
    %0 = arith.cmpi eq, %arg1, %c0_i32 : i32
    %1 = arith.extui %0 : i1 to i32
    %c0_i32_0 = arith.constant 0 : i32
    %2 = arith.cmpi ne, %1, %c0_i32_0 : i32
    scf.if %2 {
      %c0_45 = arith.constant 0 : index
      %c0_46 = arith.constant 0 : index
      %c0_47 = arith.constant 0 : index
      %79 = vector.load %arg3[%c0_45, %c0_46, %c0_47] : memref<1x8x32xf32, #tpu.memory_space<vmem>>, vector<1x8x32xf32>
      %80 = vector.shape_cast %79 : vector<1x8x32xf32> to vector<8x32xf32>
      %81 = arith.mulf %80, %80 : vector<8x32xf32>
      %cst_48 = arith.constant dense<0.000000e+00> : vector<8xf32>
      %82 = vector.multi_reduction <add>, %81, %cst_48 [1] : vector<8x32xf32> to vector<8xf32>
      %83 = vector.shape_cast %82 : vector<8xf32> to vector<8x1xf32>
      %cst_49 = arith.constant 1.000000e-24 : f32
      %84 = vector.broadcast %cst_49 : f32 to vector<8x1xf32>
      %85 = arith.maximumf %83, %84 : vector<8x1xf32>
      %86 = math.rsqrt %85 : vector<8x1xf32>
      %87 = vector.broadcast %86 : vector<8x1xf32> to vector<8x32xf32>
      %88 = arith.mulf %80, %87 : vector<8x32xf32>
      %89 = arith.truncf %88 : vector<8x32xf32> to vector<8x32xbf16>
      %c0_50 = arith.constant 0 : index
      %c0_51 = arith.constant 0 : index
      %90 = vector.load %arg10[%c0_50, %c0_51] : memref<8x32xbf16, #tpu.memory_space<vmem>>, vector<8x32xbf16>
      tpu.vector_store %arg10[%c0_50, %c0_51], %89 {strides = array<i32>} : memref<8x32xbf16, #tpu.memory_space<vmem>>, vector<8x32xbf16>,
      %cst_52 = arith.constant 0xFF800000 : f32
      %91 = vector.broadcast %cst_52 : f32 to vector<1x8xf32>
      %c0_53 = arith.constant 0 : index
      %c0_54 = arith.constant 0 : index
      %92 = vector.load %arg11[%c0_53, %c0_54] : memref<1x8xf32, #tpu.memory_space<vmem>>, vector<1x8xf32>
      tpu.vector_store %arg11[%c0_53, %c0_54], %91 {strides = array<i32>} : memref<1x8xf32, #tpu.memory_space<vmem>>, vector<1x8xf32>,
      %cst_55 = arith.constant 0.000000e+00 : f32
      %93 = vector.broadcast %cst_55 : f32 to vector<1x8xf32>
      %c0_56 = arith.constant 0 : index
      %c0_57 = arith.constant 0 : index
      %94 = vector.load %arg12[%c0_56, %c0_57] : memref<1x8xf32, #tpu.memory_space<vmem>>, vector<1x8xf32>
      tpu.vector_store %arg12[%c0_56, %c0_57], %93 {strides = array<i32>} : memref<1x8xf32, #tpu.memory_space<vmem>>, vector<1x8xf32>,
      %cst_58 = arith.constant 0.000000e+00 : f32
      %95 = vector.broadcast %cst_58 : f32 to vector<1x1xf32>
      %c0_59 = arith.constant 0 : index
      %c0_60 = arith.constant 0 : index
      %96 = vector.load %arg13[%c0_59, %c0_60] : memref<1x1xf32, #tpu.memory_space<vmem>>, vector<1x1xf32>
      tpu.vector_store %arg13[%c0_59, %c0_60], %95 {strides = array<i32>} : memref<1x1xf32, #tpu.memory_space<vmem>>, vector<1x1xf32>,
      %cst_61 = arith.constant 0.000000e+00 : f32
      %97 = vector.broadcast %cst_61 : f32 to vector<1x1xf32>
      %c0_62 = arith.constant 0 : index
      %c0_63 = arith.constant 0 : index
      %98 = vector.load %arg14[%c0_62, %c0_63] : memref<1x1xf32, #tpu.memory_space<vmem>>, vector<1x1xf32>
      tpu.vector_store %arg14[%c0_62, %c0_63], %97 {strides = array<i32>} : memref<1x1xf32, #tpu.memory_space<vmem>>, vector<1x1xf32>,
    } else {
    }
    %c0 = arith.constant 0 : index
    %3 = memref.load %arg8[%c0] : memref<1xf32, #tpu.memory_space<smem>>
    %c0_1 = arith.constant 0 : index
    %c0_2 = arith.constant 0 : index
    %c0_3 = arith.constant 0 : index
    %4 = vector.load %arg2[%c0_1, %c0_2, %c0_3] : memref<1x8x32xf32, #tpu.memory_space<vmem>>, vector<1x8x32xf32>
    %5 = vector.shape_cast %4 : vector<1x8x32xf32> to vector<8x32xf32>
    %6 = arith.mulf %5, %5 : vector<8x32xf32>
    %cst = arith.constant dense<0.000000e+00> : vector<8xf32>
    %7 = vector.multi_reduction <add>, %6, %cst [1] : vector<8x32xf32> to vector<8xf32>
    %8 = vector.shape_cast %7 : vector<8xf32> to vector<8x1xf32>
    %cst_4 = arith.constant 1.000000e-24 : f32
    %9 = vector.broadcast %cst_4 : f32 to vector<8x1xf32>
    %10 = arith.maximumf %8, %9 : vector<8x1xf32>
    %11 = math.rsqrt %10 : vector<8x1xf32>
    %12 = vector.broadcast %3 : f32 to vector<8x1xf32>
    %13 = arith.mulf %11, %12 : vector<8x1xf32>
    %14 = vector.broadcast %13 : vector<8x1xf32> to vector<8x32xf32>
    %15 = arith.mulf %5, %14 : vector<8x32xf32>
    %16 = arith.truncf %15 : vector<8x32xf32> to vector<8x32xbf16>
    %c0_5 = arith.constant 0 : index
    %c0_6 = arith.constant 0 : index
    %17 = vector.load %arg10[%c0_5, %c0_6] : memref<8x32xbf16, #tpu.memory_space<vmem>>, vector<8x32xbf16>
    %cst_7 = arith.constant dense<0.000000e+00> : vector<8x8xf32>
    %18 = tpu.matmul %16, %17, %cst_7 {dimension_numbers = #tpu.dot_dimension_numbers<[1], [1], [0], [0], [0, 0, 1, 0], [], []>} : vector<8x32xbf16>, vector<8x32xbf16>, vector<8x8xf32> -> vector<8x8xf32>
    %cst_8 = arith.constant dense<0xFF800000> : vector<8xf32>
    %19 = vector.multi_reduction <maximumf>, %18, %cst_8 [1] : vector<8x8xf32> to vector<8xf32>
    %20 = vector.shape_cast %19 : vector<8xf32> to vector<8x1xf32>
    %21 = vector.broadcast %20 : vector<8x1xf32> to vector<8x8xf32>
    %22 = arith.subf %18, %21 : vector<8x8xf32>
    %23 = math.exp %22 : vector<8x8xf32>
    %cst_9 = arith.constant dense<0.000000e+00> : vector<8xf32>
    %24 = vector.multi_reduction <add>, %23, %cst_9 [1] : vector<8x8xf32> to vector<8xf32>
    %25 = vector.shape_cast %24 : vector<8xf32> to vector<8x1xf32>
    %26 = math.log %25 : vector<8x1xf32>
    %27 = arith.addf %20, %26 : vector<8x1xf32>
    %c0_10 = arith.constant 0 : index
    %c0_11 = arith.constant 0 : index
    %28 = vector.load %arg13[%c0_10, %c0_11] : memref<1x1xf32, #tpu.memory_space<vmem>>, vector<1x1xf32>
    %c0_12 = arith.constant 0 : index
    %c0_13 = arith.constant 0 : index
    %29 = vector.load %arg6[%c0_12, %c0_13] : memref<8x1xf32, #tpu.memory_space<vmem>>, vector<8x1xf32>
    %30 = arith.mulf %29, %27 : vector<8x1xf32>
    %cst_14 = arith.constant dense<0.000000e+00> : vector<1xf32>
    %31 = vector.multi_reduction <add>, %30, %cst_14 [0] : vector<8x1xf32> to vector<1xf32>
    %32 = vector.shape_cast %31 : vector<1xf32> to vector<1x1xf32>
    %33 = arith.addf %28, %32 : vector<1x1xf32>
    %c0_15 = arith.constant 0 : index
    %c0_16 = arith.constant 0 : index
    %34 = vector.load %arg13[%c0_15, %c0_16] : memref<1x1xf32, #tpu.memory_space<vmem>>, vector<1x1xf32>
    tpu.vector_store %arg13[%c0_15, %c0_16], %33 {strides = array<i32>} : memref<1x1xf32, #tpu.memory_space<vmem>>, vector<1x1xf32>,
    %c0_17 = arith.constant 0 : index
    %c0_18 = arith.constant 0 : index
    %35 = vector.load %arg4[%c0_17, %c0_18] : memref<8x1xi32, #tpu.memory_space<vmem>>, vector<8x1xi32>
    %c0_19 = arith.constant 0 : index
    %c0_20 = arith.constant 0 : index
    %36 = vector.load %arg5[%c0_19, %c0_20] : memref<1x8xi32, #tpu.memory_space<vmem>>, vector<1x8xi32>
    %37 = vector.broadcast %35 : vector<8x1xi32> to vector<8x8xi32>
    %38 = vector.broadcast %36 : vector<1x8xi32> to vector<8x8xi32>
    %39 = arith.cmpi eq, %37, %38 : vector<8x8xi32>
    %c0_21 = arith.constant 0 : index
    %c0_22 = arith.constant 0 : index
    %40 = vector.load %arg14[%c0_21, %c0_22] : memref<1x1xf32, #tpu.memory_space<vmem>>, vector<1x1xf32>
    %cst_23 = arith.constant 0.000000e+00 : f32
    %41 = vector.broadcast %cst_23 : f32 to vector<8x8xf32>
    %42 = arith.select %39, %18, %41 : vector<8x8xi1>, vector<8x8xf32>
    %cst_24 = arith.constant dense<0.000000e+00> : vector<8xf32>
    %43 = vector.multi_reduction <add>, %42, %cst_24 [1] : vector<8x8xf32> to vector<8xf32>
    %44 = vector.shape_cast %43 : vector<8xf32> to vector<8x1xf32>
    %cst_25 = arith.constant dense<0.000000e+00> : vector<1xf32>
    %45 = vector.multi_reduction <add>, %44, %cst_25 [0] : vector<8x1xf32> to vector<1xf32>
    %46 = vector.shape_cast %45 : vector<1xf32> to vector<1x1xf32>
    %47 = arith.addf %40, %46 : vector<1x1xf32>
    %c0_26 = arith.constant 0 : index
    %c0_27 = arith.constant 0 : index
    %48 = vector.load %arg14[%c0_26, %c0_27] : memref<1x1xf32, #tpu.memory_space<vmem>>, vector<1x1xf32>
    tpu.vector_store %arg14[%c0_26, %c0_27], %47 {strides = array<i32>} : memref<1x1xf32, #tpu.memory_space<vmem>>, vector<1x1xf32>,
    %cst_28 = arith.constant dense<0xFF800000> : vector<8xf32>
    %49 = vector.multi_reduction <maximumf>, %18, %cst_28 [0] : vector<8x8xf32> to vector<8xf32>
    %50 = vector.shape_cast %49 : vector<8xf32> to vector<1x8xf32>
    %c0_29 = arith.constant 0 : index
    %c0_30 = arith.constant 0 : index
    %51 = vector.load %arg11[%c0_29, %c0_30] : memref<1x8xf32, #tpu.memory_space<vmem>>, vector<1x8xf32>
    %52 = arith.maximumf %51, %50 : vector<1x8xf32>
    %cst_31 = arith.constant dense<0xFF800000> : vector<1xf32>
    %53 = vector.multi_reduction <maximumf>, %20, %cst_31 [0] : vector<8x1xf32> to vector<1xf32>
    %54 = vector.shape_cast %53 : vector<1xf32> to vector<1x1xf32>
    %55 = vector.broadcast %54 : vector<1x1xf32> to vector<8x1xf32>
    %56 = arith.subf %20, %55 : vector<8x1xf32>
    %57 = math.exp %56 : vector<8x1xf32>
    %58 = vector.broadcast %54 : vector<1x1xf32> to vector<1x8xf32>
    %59 = arith.subf %58, %52 : vector<1x8xf32>
    %cst_32 = arith.constant 6.000000e+01 : f32
    %60 = vector.broadcast %cst_32 : f32 to vector<1x8xf32>
    %61 = arith.minimumf %59, %60 : vector<1x8xf32>
    %62 = math.exp %61 : vector<1x8xf32>
    %63 = vector.broadcast %57 : vector<8x1xf32> to vector<8x8xf32>
    %64 = arith.mulf %23, %63 : vector<8x8xf32>
    %cst_33 = arith.constant dense<0.000000e+00> : vector<8xf32>
    %65 = vector.multi_reduction <add>, %64, %cst_33 [0] : vector<8x8xf32> to vector<8xf32>
    %66 = vector.shape_cast %65 : vector<8xf32> to vector<1x8xf32>
    %67 = arith.mulf %66, %62 : vector<1x8xf32>
    %c0_34 = arith.constant 0 : index
    %c0_35 = arith.constant 0 : index
    %68 = vector.load %arg12[%c0_34, %c0_35] : memref<1x8xf32, #tpu.memory_space<vmem>>, vector<1x8xf32>
    %c0_36 = arith.constant 0 : index
    %c0_37 = arith.constant 0 : index
    %69 = vector.load %arg11[%c0_36, %c0_37] : memref<1x8xf32, #tpu.memory_space<vmem>>, vector<1x8xf32>
    %70 = arith.subf %69, %52 : vector<1x8xf32>
    %71 = math.exp %70 : vector<1x8xf32>
    %72 = arith.mulf %68, %71 : vector<1x8xf32>
    %73 = arith.addf %72, %67 : vector<1x8xf32>
    %c0_38 = arith.constant 0 : index
    %c0_39 = arith.constant 0 : index
    %74 = vector.load %arg12[%c0_38, %c0_39] : memref<1x8xf32, #tpu.memory_space<vmem>>, vector<1x8xf32>
    tpu.vector_store %arg12[%c0_38, %c0_39], %73 {strides = array<i32>} : memref<1x8xf32, #tpu.memory_space<vmem>>, vector<1x8xf32>,
    %c0_40 = arith.constant 0 : index
    %c0_41 = arith.constant 0 : index
    %75 = vector.load %arg11[%c0_40, %c0_41] : memref<1x8xf32, #tpu.memory_space<vmem>>, vector<1x8xf32>
    tpu.vector_store %arg11[%c0_40, %c0_41], %52 {strides = array<i32>} : memref<1x8xf32, #tpu.memory_space<vmem>>, vector<1x8xf32>,
    %c0_i32_42 = arith.constant 0 : i32
    %76 = arith.cmpi eq, %arg1, %c0_i32_42 : i32
    %77 = arith.extui %76 : i1 to i32
    %cst_43 = arith.constant 8.000000e+00 : f32
    %c0_i32_44 = arith.constant 0 : i32
    %78 = arith.cmpi ne, %77, %c0_i32_44 : i32
    scf.if %78 {
      %c0_45 = arith.constant 0 : index
      %c0_46 = arith.constant 0 : index
      %79 = vector.load %arg11[%c0_45, %c0_46] : memref<1x8xf32, #tpu.memory_space<vmem>>, vector<1x8xf32>
      %c0_47 = arith.constant 0 : index
      %c0_48 = arith.constant 0 : index
      %80 = vector.load %arg12[%c0_47, %c0_48] : memref<1x8xf32, #tpu.memory_space<vmem>>, vector<1x8xf32>
      %cst_49 = arith.constant 1.000000e+00 : f32
      %81 = vector.broadcast %cst_49 : f32 to vector<1x8xf32>
      %82 = arith.maximumf %80, %81 : vector<1x8xf32>
      %83 = math.log %82 : vector<1x8xf32>
      %84 = arith.addf %79, %83 : vector<1x8xf32>
      %c0_50 = arith.constant 0 : index
      %c0_51 = arith.constant 0 : index
      %85 = vector.load %arg7[%c0_50, %c0_51] : memref<1x8xf32, #tpu.memory_space<vmem>>, vector<1x8xf32>
      %86 = arith.mulf %85, %84 : vector<1x8xf32>
      %cst_52 = arith.constant dense<0.000000e+00> : vector<1xf32>
      %87 = vector.multi_reduction <add>, %86, %cst_52 [1] : vector<1x8xf32> to vector<1xf32>
      %88 = vector.shape_cast %87 : vector<1xf32> to vector<1x1xf32>
      %cst_53 = arith.constant 1.000000e+00 : f32
      %89 = arith.divf %cst_53, %cst_43 : f32
      %c0_54 = arith.constant 0 : index
      %c0_55 = arith.constant 0 : index
      %90 = vector.load %arg13[%c0_54, %c0_55] : memref<1x1xf32, #tpu.memory_space<vmem>>, vector<1x1xf32>
      %c0_56 = arith.constant 0 : index
      %c0_57 = arith.constant 0 : index
      %91 = vector.load %arg14[%c0_56, %c0_57] : memref<1x1xf32, #tpu.memory_space<vmem>>, vector<1x1xf32>
      %92 = arith.subf %90, %91 : vector<1x1xf32>
      %93 = vector.broadcast %89 : f32 to vector<1x1xf32>
      %94 = arith.mulf %92, %93 : vector<1x1xf32>
      %c0_58 = arith.constant 0 : index
      %c0_59 = arith.constant 0 : index
      %95 = vector.load %arg14[%c0_58, %c0_59] : memref<1x1xf32, #tpu.memory_space<vmem>>, vector<1x1xf32>
      %96 = arith.subf %88, %95 : vector<1x1xf32>
      %97 = vector.broadcast %89 : f32 to vector<1x1xf32>
      %98 = arith.mulf %96, %97 : vector<1x1xf32>
      %99 = arith.addf %94, %98 : vector<1x1xf32>
      %c0_60 = arith.constant 0 : index
      %c0_61 = arith.constant 0 : index
      %c0_62 = arith.constant 0 : index
      %100 = vector.load %arg9[%c0_60, %c0_61, %c0_62] : memref<1x1x1xf32, #tpu.memory_space<vmem>>, vector<1x1x1xf32>
      %101 = vector.shape_cast %100 : vector<1x1x1xf32> to vector<1x1xf32>
      %102 = vector.shape_cast %99 : vector<1x1xf32> to vector<1x1x1xf32>
      tpu.vector_store %arg9[%c0_60, %c0_61, %c0_62], %102 {strides = array<i32>} : memref<1x1x1xf32, #tpu.memory_space<vmem>>, vector<1x1x1xf32>,
    } else {
    }
    return
  }
  func.func @transform_0(%arg0: i32, %arg1: i32) -> (i32, i32, i32) {
    %c1_i32 = arith.constant 1 : i32
    %0 = arith.subi %arg0, %c1_i32 : i32
    %c0_i32 = arith.constant 0 : i32
    %1 = arith.maxsi %0, %c0_i32 : i32
    %c0_i32_0 = arith.constant 0 : i32
    %c0_i32_1 = arith.constant 0 : i32
    return %1, %arg1, %c0_i32_0 : i32, i32, i32
  }
  func.func @transform_1(%arg0: i32, %arg1: i32) -> (i32, i32, i32) {
    %c1_i32 = arith.constant 1 : i32
    %0 = arith.addi %arg0, %c1_i32 : i32
    %c2_i32 = arith.constant 2 : i32
    %1 = arith.minsi %0, %c2_i32 : i32
    %c0_i32 = arith.constant 0 : i32
    %c0_i32_0 = arith.constant 0 : i32
    %c0_i32_1 = arith.constant 0 : i32
    return %1, %c0_i32, %c0_i32_0 : i32, i32, i32
  }
  func.func @transform_2(%arg0: i32, %arg1: i32) -> (i32, i32) {
    %c0_i32 = arith.constant 0 : i32
    %c0_i32_0 = arith.constant 0 : i32
    return %arg1, %c0_i32 : i32, i32
  }
  func.func @transform_3(%arg0: i32, %arg1: i32) -> (i32, i32) {
    %c0_i32 = arith.constant 0 : i32
    %c0_i32_0 = arith.constant 0 : i32
    %c0_i32_1 = arith.constant 0 : i32
    return %c0_i32, %c0_i32_0 : i32, i32
  }
  func.func @transform_4(%arg0: i32, %arg1: i32) -> (i32, i32) {
    %c0_i32 = arith.constant 0 : i32
    %c0_i32_0 = arith.constant 0 : i32
    return %arg1, %c0_i32 : i32, i32
  }
  func.func @transform_5(%arg0: i32, %arg1: i32) -> (i32, i32) {
    %c0_i32 = arith.constant 0 : i32
    %c0_i32_0 = arith.constant 0 : i32
    %c0_i32_1 = arith.constant 0 : i32
    return %c0_i32, %c0_i32_0 : i32, i32
  }
  func.func @transform_6(%arg0: i32, %arg1: i32) -> i32 {
    %c0_i32 = arith.constant 0 : i32
    %c0_i32_0 = arith.constant 0 : i32
    return %c0_i32 : i32
  }
  func.func @transform_7(%arg0: i32, %arg1: i32) -> (i32, i32, i32) {
    %c0_i32 = arith.constant 0 : i32
    %c0_i32_0 = arith.constant 0 : i32
    %c0_i32_1 = arith.constant 0 : i32
    return %arg0, %c0_i32, %c0_i32_0 : i32, i32, i32
  }
}

</mosaic_0001>

<llo_original>
// kernel: tpu_custom_call.1
$region0: #{tpu_custom_call.1}
  #allocation0 [shape = 'u32[]', space=smem, size = 0x4, offset = 0x4, fixed_abs, tag = 'smem constant byte address 0x4 - core index']
  #allocation1 [shape = 'u32[72,128]{1,0:T(1,128)}', space=vmem, size = 0x9000, scoped, tag = 'internal scratch']
  #allocation2 [shape = 'bf16[8,32]{1,0:T(8,128)(2,1)}', space=vmem, size = 0x800, scoped, tag = 'scratch operand']
  #allocation3 [shape = 'f32[1,8]{1,0:T(1,128)}', space=vmem, size = 0x200, scoped, tag = 'scratch operand']
  #allocation4 [shape = 'f32[1,8]{1,0:T(1,128)}', space=vmem, size = 0x200, scoped, tag = 'scratch operand']
  #allocation5 [shape = 'f32[1,1]{1,0:T(1,128)}', space=vmem, size = 0x200, scoped, tag = 'scratch operand']
  #allocation6 [shape = 'f32[1,1]{1,0:T(1,128)}', space=vmem, size = 0x200, scoped, tag = 'scratch operand']
  #allocation7 [shape = 'f32[1]{0:T(128)S(6)}', space=smem, size = 0x200, scoped, tag = 'scoped memory for tpu_custom_call.1']
  %s0 = inlined_call_operand.hbm [shape: f32[3,8,32], index: 0, kind: input, shape index: {}]
  %s1 = inlined_call_operand.hbm [shape: f32[3,8,32], index: 1, kind: input, shape index: {}]
  %s2 = inlined_call_operand.vmem [shape: s32[8,1], index: 2, kind: input, shape index: {}]
  %s3 = inlined_call_operand.vmem [shape: s32[1,8], index: 3, kind: input, shape index: {}]
  %s4 = inlined_call_operand.vmem [shape: f32[8,1], index: 4, kind: input, shape index: {}]
  %s5 = inlined_call_operand.vmem [shape: f32[1,8], index: 5, kind: input, shape index: {}]
  %s6 = inlined_call_operand.<no memory space> [shape: f32[1], index: 6, kind: input, shape index: {}]
  %s7 = inlined_call_operand.vmem [shape: f32[3,1,1], index: 7, kind: output, shape index: {}]
  %s8 = sld [smem:[#allocation0]]
  $region77: #{tpu_custom_call.1} parent=0
    _
  %s10 = ssub.s32 1, %s8
  %s11 = scalar_select 0, %s10, %s8
  %12 = sst [smem:[#allocation7]] %s6
  $region1: #{tpu_custom_call.1} parent=0
    #allocation8 [shape = 'u8[8192]{0}', space=vmem, size = 0x2000, scoped, tag = 'input window, operand 0']
    #allocation9 [shape = 's32[2]{0}', space=sflag, size = 0x8, scoped, tag = 'scoped memory for tpu_custom_call.1']
    #allocation10 [shape = 'u8[8192]{0}', space=vmem, size = 0x2000, scoped, tag = 'input window, operand 1']
    #allocation11 [shape = 's32[2]{0}', space=sflag, size = 0x8, scoped, tag = 'scoped memory for tpu_custom_call.1']
    %13 = vsyncpa [#allocation9], 0
    %s14 = scalar_lea.sflag [#allocation9], 1
    %15 = vsyncpa %s14, 0
    %16 = vsyncpa [#allocation11], 0
    %s17 = scalar_lea.sflag [#allocation11], 1
    %18 = vsyncpa %s17, 0
    loop: start=0, step=1, limit=5
    $region2: #{tpu_custom_call.1} parent=1 // loop_pre_header
      _
    $region3: #{tpu_custom_call.1} parent=1 // loop_header
      %s20 = sphi 0, %s24
      %p21 = scmp.ge.s32.totalorder %s20, 5
      %s27 = sphi 0, %s39
      %s28 = sphi 0, %s35
      %s29 = sphi 0, %s27
      %s30 = sphi 0, %s28
      %s31 = sphi 0, %s29
      %s32 = sphi 0, %s30
      %s50 = sphi 0, %s52
      %s53 = sphi 0, %s50
      %s54 = sphi 0, %s53
      %s70 = sphi 0, %s54
      %s82 = sphi 0, %s84
      %s85 = sphi 0, %s82
      %s86 = sphi 0, %s85
      %s102 = sphi 0, %s86
      %s108 = sphi 0, %s110
      %s111 = sphi 0, %s108
      %s112 = sphi 0, %s111
      %s128 = sphi 0, %s112
      %s132 = sphi 0, %s132
      %s134 = sphi 0, %s132
      %s135 = sphi 0, %s134
      %s149 = sphi 0, %s135
      %s155 = sphi 0, %s157
      %s158 = sphi 0, %s155
      %s159 = sphi 0, %s158
      %s175 = sphi 0, %s159
      %s179 = sphi 0, %s179
      %s181 = sphi 0, %s179
      %s182 = sphi 0, %s181
      %s196 = sphi 0, %s182
      %s200 = sphi 0, %s200
      %s202 = sphi 0, %s200
      %s203 = sphi 0, %s202
      %s217 = sphi 0, %s203
      %s223 = sphi 0, %s225
      %s226 = sphi 0, %s223
      %s227 = sphi 0, %s226
      %s243 = sphi 0, %s227
    $region4: #{tpu_custom_call.1} parent=1 // loop_header_branch
      %23 = sbr.rel (%p21) target = $region8
    $region5: #{tpu_custom_call.1} parent=1 // loop_body
      %s25 = ssub.s32 %s20, 1
      %s26 = ssub.s32 %s20, 2
      %s33 = sadd.s32 1, %s28
      %p34 = scmp.ge.s32.totalorder %s33, 1
      %s35 = scalar_select %p34, 0, %s33
      %s36 = sadd.s32 1, %s27
      %s37 = scalar_select %p34, %s36, %s27
      %p38 = scmp.ge.s32.totalorder %s37, 3
      %s39 = scalar_select %p38, 0, %s37
      %s40 = ssub.s32 %s27, 1
      %p41 = scmp.gt.s32.totalorder %s40, 0
      %s42 = scalar_select %p41, %s40, 0
      %s43 = ssub.s32 %s39, 1
      %p44 = scmp.gt.s32.totalorder %s43, 0
      %s45 = scalar_select %p44, %s43, 0
      %s46 = ssub.s32 %s42, %s45
      %s47 = ssub.s32 %s28, %s35
      %s48 = sor.u32 %s46, %s47
      %p49 = scmp.eq.s32.totalorder %s48, 0
      %s51 = sadd.s32 %s50, 1
      %s52 = scalar_select %p49, %s50, %s51
      %p55 = pneg %p49
      %p56 = scmp.eq.s32.totalorder %s20, 2
      %p57 = por %p55, %p56
      %p58 = scmp.ne.s32.totalorder %s50, %s53
      %p59 = scmp.eq.s32.totalorder %s20, 0
      %p60 = por %p58, %p59
      %p61 = scmp.ne.s32.totalorder %s50, %s53
      %p62 = scmp.eq.s32.totalorder %s25, 2
      %p63 = por %p61, %p62
      %p64 = scmp.ne.s32.totalorder %s53, %s54
      %p65 = scmp.eq.s32.totalorder %s25, 0
      %p66 = por %p64, %p65
      %p67 = scmp.ne.s32.totalorder %s53, %s54
      %p68 = scmp.eq.s32.totalorder %s26, 2
      %p69 = por %p67, %p68
      %p71 = scmp.ne.s32.totalorder %s54, %s70
      %p72 = scmp.eq.s32.totalorder %s26, 0
      %p73 = por %p71, %p72
      %s74 = sadd.s32 %s27, 1
      %p75 = scmp.lt.s32.totalorder %s74, 2
      %s76 = scalar_select %p75, %s74, 2
      %s77 = sadd.s32 %s39, 1
      %p78 = scmp.lt.s32.totalorder %s77, 2
      %s79 = scalar_select %p78, %s77, 2
      %s80 = ssub.s32 %s76, %s79
      %p81 = scmp.eq.s32.totalorder %s80, 0
      %s83 = sadd.s32 %s82, 1
      %s84 = scalar_select %p81, %s82, %s83
      %p87 = pneg %p81
      %p88 = scmp.eq.s32.totalorder %s20, 2
      %p89 = por %p87, %p88
      %p90 = scmp.ne.s32.totalorder %s82, %s85
      %p91 = scmp.eq.s32.totalorder %s20, 0
      %p92 = por %p90, %p91
      %p93 = scmp.ne.s32.totalorder %s82, %s85
      %p94 = scmp.eq.s32.totalorder %s25, 2
      %p95 = por %p93, %p94
      %p96 = scmp.ne.s32.totalorder %s85, %s86
      %p97 = scmp.eq.s32.totalorder %s25, 0
      %p98 = por %p96, %p97
      %p99 = scmp.ne.s32.totalorder %s85, %s86
      %p100 = scmp.eq.s32.totalorder %s26, 2
      %p101 = por %p99, %p100
      %p103 = scmp.ne.s32.totalorder %s86, %s102
      %p104 = scmp.eq.s32.totalorder %s26, 0
      %p105 = por %p103, %p104
      %s106 = ssub.s32 %s28, %s35
      %p107 = scmp.eq.s32.totalorder %s106, 0
      %s109 = sadd.s32 %s108, 1
      %s110 = scalar_select %p107, %s108, %s109
      %p113 = pneg %p107
      %p114 = scmp.eq.s32.totalorder %s20, 2
      %p115 = por %p113, %p114
      %p116 = scmp.ne.s32.totalorder %s108, %s111
      %p117 = scmp.eq.s32.totalorder %s20, 0
      %p118 = por %p116, %p117
      %p119 = scmp.ne.s32.totalorder %s108, %s111
      %p120 = scmp.eq.s32.totalorder %s25, 2
      %p121 = por %p119, %p120
      %p122 = scmp.ne.s32.totalorder %s111, %s112
      %p123 = scmp.eq.s32.totalorder %s25, 0
      %p124 = por %p122, %p123
      %p125 = scmp.ne.s32.totalorder %s111, %s112
      %p126 = scmp.eq.s32.totalorder %s26, 2
      %p127 = por %p125, %p126
      %p129 = scmp.ne.s32.totalorder %s112, %s128
      %p130 = scmp.eq.s32.totalorder %s26, 0
      %p131 = por %p129, %p130
      %s133 = sadd.s32 %s132, 1
      %p136 = scmp.eq.s32.totalorder %s20, 2
      %p137 = scmp.ne.s32.totalorder %s132, %s134
      %p138 = scmp.eq.s32.totalorder %s20, 0
      %p139 = por %p137, %p138
      %p140 = scmp.ne.s32.totalorder %s132, %s134
      %p141 = scmp.eq.s32.totalorder %s25, 2
      %p142 = por %p140, %p141
      %p143 = scmp.ne.s32.totalorder %s134, %s135
      %p144 = scmp.eq.s32.totalorder %s25, 0
      %p145 = por %p143, %p144
      %p146 = scmp.ne.s32.totalorder %s134, %s135
      %p147 = scmp.eq.s32.totalorder %s26, 2
      %p148 = por %p146, %p147
      %p150 = scmp.ne.s32.totalorder %s135, %s149
      %p151 = scmp.eq.s32.totalorder %s26, 0
      %p152 = por %p150, %p151
      %s153 = ssub.s32 %s28, %s35
      %p154 = scmp.eq.s32.totalorder %s153, 0
      %s156 = sadd.s32 %s155, 1
      %s157 = scalar_select %p154, %s155, %s156
      %p160 = pneg %p154
      %p161 = scmp.eq.s32.totalorder %s20, 2
      %p162 = por %p160, %p161
      %p163 = scmp.ne.s32.totalorder %s155, %s158
      %p164 = scmp.eq.s32.totalorder %s20, 0
      %p165 = por %p163, %p164
      %p166 = scmp.ne.s32.totalorder %s155, %s158
      %p167 = scmp.eq.s32.totalorder %s25, 2
      %p168 = por %p166, %p167
      %p169 = scmp.ne.s32.totalorder %s158, %s159
      %p170 = scmp.eq.s32.totalorder %s25, 0
      %p171 = por %p169, %p170
      %p172 = scmp.ne.s32.totalorder %s158, %s159
      %p173 = scmp.eq.s32.totalorder %s26, 2
      %p174 = por %p172, %p173
      %p176 = scmp.ne.s32.totalorder %s159, %s175
      %p177 = scmp.eq.s32.totalorder %s26, 0
      %p178 = por %p176, %p177
      %s180 = sadd.s32 %s179, 1
      %p183 = scmp.eq.s32.totalorder %s20, 2
      %p184 = scmp.ne.s32.totalorder %s179, %s181
      %p185 = scmp.eq.s32.totalorder %s20, 0
      %p186 = por %p184, %p185
      %p187 = scmp.ne.s32.totalorder %s179, %s181
      %p188 = scmp.eq.s32.totalorder %s25, 2
      %p189 = por %p187, %p188
      %p190 = scmp.ne.s32.totalorder %s181, %s182
      %p191 = scmp.eq.s32.totalorder %s25, 0
      %p192 = por %p190, %p191
      %p193 = scmp.ne.s32.totalorder %s181, %s182
      %p194 = scmp.eq.s32.totalorder %s26, 2
      %p195 = por %p193, %p194
      %p197 = scmp.ne.s32.totalorder %s182, %s196
      %p198 = scmp.eq.s32.totalorder %s26, 0
      %p199 = por %p197, %p198
      %s201 = sadd.s32 %s200, 1
      %p204 = scmp.eq.s32.totalorder %s20, 2
      %p205 = scmp.ne.s32.totalorder %s200, %s202
      %p206 = scmp.eq.s32.totalorder %s20, 0
      %p207 = por %p205, %p206
      %p208 = scmp.ne.s32.totalorder %s200, %s202
      %p209 = scmp.eq.s32.totalorder %s25, 2
      %p210 = por %p208, %p209
      %p211 = scmp.ne.s32.totalorder %s202, %s203
      %p212 = scmp.eq.s32.totalorder %s25, 0
      %p213 = por %p211, %p212
      %p214 = scmp.ne.s32.totalorder %s202, %s203
      %p215 = scmp.eq.s32.totalorder %s26, 2
      %p216 = por %p214, %p215
      %p218 = scmp.ne.s32.totalorder %s203, %s217
      %p219 = scmp.eq.s32.totalorder %s26, 0
      %p220 = por %p218, %p219
      %s221 = ssub.s32 %s27, %s39
      %p222 = scmp.eq.s32.totalorder %s221, 0
      %s224 = sadd.s32 %s223, 1
      %s225 = scalar_select %p222, %s223, %s224
      %p228 = pneg %p222
      %p229 = scmp.eq.s32.totalorder %s20, 2
      %p230 = por %p228, %p229
      %p231 = scmp.ne.s32.totalorder %s223, %s226
      %p232 = scmp.eq.s32.totalorder %s20, 0
      %p233 = por %p231, %p232
      %p234 = scmp.ne.s32.totalorder %s223, %s226
      %p235 = scmp.eq.s32.totalorder %s25, 2
      %p236 = por %p234, %p235
      %p237 = scmp.ne.s32.totalorder %s226, %s227
      %p238 = scmp.eq.s32.totalorder %s25, 0
      %p239 = por %p237, %p238
      %p240 = scmp.ne.s32.totalorder %s226, %s227
      %p241 = scmp.eq.s32.totalorder %s26, 2
      %p242 = por %p240, %p241
      %p244 = scmp.ne.s32.totalorder %s227, %s243
      %p245 = scmp.eq.s32.totalorder %s26, 0
      %p246 = por %p244, %p245
      %p247 = scmp.le.s32.totalorder 1, %s20
      %p248 = scmp.lt.s32.totalorder %s20, 4
      %p249 = pnand %p247, %p248
      %p250 = pneg %p249
      // Predicated region
      $region9: #{tpu_custom_call.1} parent=5 // pred_check
        _
      $region10: #{tpu_custom_call.1} parent=5 // pred_check_branch
        %252 = sbr.rel (%p249) target = $region12
      $region11: #{tpu_custom_call.1} parent=5 // pred_region
        %s253 = ssub.s32 %s20, 1
        // Predicated region
        $region13: #{tpu_custom_call.1} parent=11 // pred_check
          %p254 = pneg %p124
        $region14: #{tpu_custom_call.1} parent=11 // pred_check_branch
          %256 = sbr.rel (%p254) target = $region16
        $region15: #{tpu_custom_call.1} parent=11 // pred_region
          %p257 = scmp.lt.s32.totalorder %s30, 0
          %s258 = scalar_select %p257, %s30, 0
          %s259 = smul.addr %s258, 8
          %s260 = scalar_lea.vmem %s2, %s259
        $region16: #{tpu_custom_call.1} parent=11 // pred_fallthru
          _
        // Predicated region
        $region17: #{tpu_custom_call.1} parent=11 // pred_check
          %p261 = pneg %p145
        $region18: #{tpu_custom_call.1} parent=11 // pred_check_branch
          %263 = sbr.rel (%p261) target = $region20
        $region19: #{tpu_custom_call.1} parent=11 // pred_region
          _
        $region20: #{tpu_custom_call.1} parent=11 // pred_fallthru
          _
        // Predicated region
        $region21: #{tpu_custom_call.1} parent=11 // pred_check
          %p264 = pneg %p171
        $region22: #{tpu_custom_call.1} parent=11 // pred_check_branch
          %266 = sbr.rel (%p264) target = $region24
        $region23: #{tpu_custom_call.1} parent=11 // pred_region
          %p267 = scmp.lt.s32.totalorder %s30, 0
          %s268 = scalar_select %p267, %s30, 0
          %s269 = smul.addr %s268, 8
          %s270 = scalar_lea.vmem %s4, %s269
        $region24: #{tpu_custom_call.1} parent=11 // pred_fallthru
          _
        // Predicated region
        $region25: #{tpu_custom_call.1} parent=11 // pred_check
          %p271 = pneg %p192
        $region26: #{tpu_custom_call.1} parent=11 // pred_check_branch
          %273 = sbr.rel (%p271) target = $region28
        $region27: #{tpu_custom_call.1} parent=11 // pred_region
          _
        $region28: #{tpu_custom_call.1} parent=11 // pred_fallthru
          _
        // Predicated region
        $region29: #{tpu_custom_call.1} parent=11 // pred_check
          %p274 = pneg %p213
        $region30: #{tpu_custom_call.1} parent=11 // pred_check_branch
          %276 = sbr.rel (%p274) target = $region32
        $region31: #{tpu_custom_call.1} parent=11 // pred_region
          _
        $region32: #{tpu_custom_call.1} parent=11 // pred_fallthru
          _
      $region12: #{tpu_custom_call.1} parent=5 // pred_fallthru
        _
      %p277 = scmp.lt.s32.totalorder %s20, 3
      // Predicated region
      $region33: #{tpu_custom_call.1} parent=5 // pred_check
        %p278 = pneg %p277
      $region34: #{tpu_custom_call.1} parent=5 // pred_check_branch
        %280 = sbr.rel (%p278) target = $region36
      $region35: #{tpu_custom_call.1} parent=5 // pred_region
        // Predicated region
        $region37: #{tpu_custom_call.1} parent=35 // pred_check
          %p281 = pneg %p60
        $region38: #{tpu_custom_call.1} parent=35 // pred_check_branch
          %283 = sbr.rel (%p281) target = $region40
        $region39: #{tpu_custom_call.1} parent=35 // pred_region
          %s284 = sand.u32 %s50, 1
          %s285 = scalar_lea.sflag [#allocation9], %s284
          %s286 = sand.u32 %s50, 1
          %s287 = smul.addr %s286, 8
          %s288 = scalar_lea.vmem [#allocation8], %s287
          %s289 = ssub.s32 %s27, 1
          %p290 = scmp.gt.s32.totalorder %s289, 0
          %s291 = scalar_select %p290, %s289, 0
          %293 = vsyncadd %s285, 0
          %s294 = sadd.s32 %s28, %s291
          %s295 = smul.addr %s294, 8
          %s296 = scalar_lea.hbm %s0, %s295
          %s298 = sshll.u32 %s296, 4
          %s299 = int_to_ptr.hbm [resolvable:$true] %s298
          %s300 = sshll.u32 %s288, 4
          %s301 = int_to_ptr.vmem [resolvable:$true] %s300
          %303 = dma.hbm_to_vmem [thread:$0]  %s299, 128, %s301, %s285
        $region40: #{tpu_custom_call.1} parent=35 // pred_fallthru
          _
        // Predicated region
        $region41: #{tpu_custom_call.1} parent=35 // pred_check
          %p304 = pneg %p92
        $region42: #{tpu_custom_call.1} parent=35 // pred_check_branch
          %306 = sbr.rel (%p304) target = $region44
        $region43: #{tpu_custom_call.1} parent=35 // pred_region
          %s307 = sand.u32 %s82, 1
          %s308 = scalar_lea.sflag [#allocation11], %s307
          %s309 = sand.u32 %s82, 1
          %s310 = smul.addr %s309, 8
          %s311 = scalar_lea.vmem [#allocation10], %s310
          %s312 = sadd.s32 %s27, 1
          %p313 = scmp.lt.s32.totalorder %s312, 2
          %s314 = scalar_select %p313, %s312, 2
          %316 = vsyncadd %s308, 0
          %s317 = smul.addr %s314, 8
          %s318 = scalar_lea.hbm %s1, %s317
          %s320 = sshll.u32 %s318, 4
          %s321 = int_to_ptr.hbm [resolvable:$true] %s320
          %s322 = sshll.u32 %s311, 4
          %s323 = int_to_ptr.vmem [resolvable:$true] %s322
          %325 = dma.hbm_to_vmem [thread:$0]  %s321, 128, %s323, %s308
        $region44: #{tpu_custom_call.1} parent=35 // pred_fallthru
          _
      $region36: #{tpu_custom_call.1} parent=5 // pred_fallthru
        _
      %p326 = scmp.le.s32.totalorder 1, %s20
      %p327 = scmp.lt.s32.totalorder %s20, 4
      %p328 = pnand %p326, %p327
      %p329 = pneg %p328
      // Predicated region
      $region45: #{tpu_custom_call.1} parent=5 // pred_check
        _
      $region46: #{tpu_custom_call.1} parent=5 // pred_check_branch
        %331 = sbr.rel (%p328) target = $region48
      $region47: #{tpu_custom_call.1} parent=5 // pred_region
        %s332 = ssub.s32 %s20, 1
        %s333 = sand.u32 %s53, 1
        %s334 = scalar_lea.sflag [#allocation9], %s333
        %s335 = sand.u32 %s53, 1
        %s336 = smul.addr %s335, 8
        %s337 = scalar_lea.vmem [#allocation8], %s336
        // Predicated region
        $region49: #{tpu_custom_call.1} parent=47 // pred_check
          %p338 = pneg %p66
        $region50: #{tpu_custom_call.1} parent=47 // pred_check_branch
          %340 = sbr.rel (%p338) target = $region52
        $region51: #{tpu_custom_call.1} parent=47 // pred_region
          %342 = dma.done %s334, 128
        $region52: #{tpu_custom_call.1} parent=47 // pred_fallthru
          _
        %s343 = sand.u32 %s85, 1
        %s344 = scalar_lea.sflag [#allocation11], %s343
        %s345 = sand.u32 %s85, 1
        %s346 = smul.addr %s345, 8
        %s347 = scalar_lea.vmem [#allocation10], %s346
        // Predicated region
        $region53: #{tpu_custom_call.1} parent=47 // pred_check
          %p348 = pneg %p98
        $region54: #{tpu_custom_call.1} parent=47 // pred_check_branch
          %350 = sbr.rel (%p348) target = $region56
        $region55: #{tpu_custom_call.1} parent=47 // pred_region
          %352 = dma.done %s344, 128
        $region56: #{tpu_custom_call.1} parent=47 // pred_fallthru
          _
        %s353 = sand.u32 %s53, 1
        %s354 = scalar_lea.sflag [#allocation9], %s353
        %s355 = sand.u32 %s53, 1
        %s356 = smul.addr %s355, 8
        %s357 = scalar_lea.vmem [#allocation8], %s356
        %p358 = pneg %p66
        %p359 = pneg %p63
        %s360 = sand.u32 %s85, 1
        %s361 = scalar_lea.sflag [#allocation11], %s360
        %s362 = sand.u32 %s85, 1
        %s363 = smul.addr %s362, 8
        %s364 = scalar_lea.vmem [#allocation10], %s363
        %p365 = pneg %p98
        %p366 = pneg %p95
        %p367 = scmp.lt.s32.totalorder %s30, 0
        %s368 = scalar_select %p367, %s30, 0
        %s369 = smul.addr %s368, 8
        %s370 = scalar_lea.vmem %s2, %s369
        %p371 = pneg %p124
        %p372 = pneg %p121
        %p373 = pneg %p145
        %p374 = pneg %p142
        %p375 = scmp.lt.s32.totalorder %s30, 0
        %s376 = scalar_select %p375, %s30, 0
        %s377 = smul.addr %s376, 8
        %s378 = scalar_lea.vmem %s4, %s377
        %p379 = pneg %p171
        %p380 = pneg %p168
        %p381 = pneg %p192
        %p382 = pneg %p189
        %p383 = pneg %p213
        %p384 = pneg %p210
        %p385 = pneg %p239
        %p386 = pneg %p236
        %p387 = scmp.lt.s32.totalorder %s29, 2
        %s388 = scalar_select %p387, %s29, 2
        %s389 = scalar_lea.vmem %s7, %s388
        %s390 = ssub.s32 %s29, 1
        %p391 = scmp.gt.s32.totalorder %s390, 0
        %s392 = scalar_select %p391, %s390, 0
        %s393 = sadd.s32 %s29, 1
        %p394 = scmp.lt.s32.totalorder %s393, 2
        %s395 = scalar_select %p394, %s393, 2
        %p396 = scmp.lt.s32.totalorder %s30, 0
        %s397 = scalar_select %p396, %s30, 0
        %s398 = smul.addr %s397, 8
        %s399 = scalar_lea.vmem %s2, %s398
        %p400 = scmp.lt.s32.totalorder %s30, 0
        %s401 = scalar_select %p400, %s30, 0
        %s402 = smul.addr %s401, 8
        %s403 = scalar_lea.vmem %s4, %s402
        %p404 = scmp.lt.s32.totalorder %s29, 2
        %s405 = scalar_select %p404, %s29, 2
        %s406 = scalar_lea.vmem %s7, %s405
        %p408 = scmp.eq.s32.totalorder %s30, 0
        // Predicated region
        $region57: #{tpu_custom_call.1} parent=47 // pred_check
          %p409 = pneg %p408
        $region58: #{tpu_custom_call.1} parent=47 // pred_check_branch
          %411 = sbr.rel (%p409) target = $region60
        $region59: #{tpu_custom_call.1} parent=47 // pred_region
          %v412 = vld [vmem:[%s347] sm:$0xff]
          %v413 = vmul.f32 %v412, %v412
          %vm414 = vcmask 261120
          %v415 = vsel %vm414, %v413, 0.0
          %416 = vadd.xlane.f32.xlu0 %v415
          %v417 = vpop.xlane.xlu0 %416
          %v418 = vmax.f32 %v417, 1e-24
          %v419 = vrsqrt.pop %v418
          %v420 = vmul.f32 %v419, %v418
          %v421 = vmul.f32 %v420, %v419
          %v422 = vmul.f32 0.5, %v421
          %v423 = vsub.f32 1.5, %v422
          %v424 = vmul.f32 %v419, %v423
          %vm425 = vweird.f32 %v418
          %vm426 = vweird.f32 %v419
          %vm427 = vmor %vm425, %vm426
          %v428 = vsel %vm427, %v419, %v424
          %v429 = vmul.f32 %v412, %v428
          %v430 = vpack.c.bf16 %v429, %v429
          %vm431 = vcmask 257024
          %432 = vst.msk [vmem:[#allocation2] sm:$0xf] %vm431, %v430
          %vm433 = vcmask 57344
          %434 = vst.msk [vmem:[#allocation3] sm:$0x1] %vm433, -inf
          %435 = vst.msk [vmem:[#allocation4] sm:$0x1] %vm433, 0.0
          %vm436 = vcmask 0
          %437 = vst.msk [vmem:[#allocation5] sm:$0x1] %vm436, 0.0
          %438 = vst.msk [vmem:[#allocation6] sm:$0x1] %vm436, 0.0
        $region60: #{tpu_custom_call.1} parent=47 // pred_fallthru
          _
        %s439 = sld [smem:[#allocation7]]
        %v440 = vld [vmem:[%s337] sm:$0xff]
        %v441 = vmul.f32 %v440, %v440
        %vm442 = vcmask 261120
        %v443 = vsel %vm442, %v441, 0.0
        %444 = vadd.xlane.f32.xlu0 %v443
        %v445 = vpop.xlane.xlu0 %444
        %v446 = vmax.f32 %v445, 1e-24
        %v447 = vrsqrt.pop %v446
        %v448 = vmul.f32 %v447, %v446
        %v449 = vmul.f32 %v448, %v447
        %v450 = vmul.f32 0.5, %v449
        %v451 = vsub.f32 1.5, %v450
        %v452 = vmul.f32 %v447, %v451
        %vm453 = vweird.f32 %v446
        %vm454 = vweird.f32 %v447
        %vm455 = vmor %vm453, %vm454
        %v456 = vsel %vm455, %v447, %v452
        %v457 = vstv %s439
        %v458 = vmul.f32 %v456, %v457
        %v459 = vmul.f32 %v440, %v458
        %v460 = vpack.c.bf16 %v459, %v459
        %v461 = vld [vmem:[#allocation2] sm:$0xf]
        %v463 = vsel %vm442, %v460, 0
        %v466 = vsel %vm442, %v461, 0
        %468 = vmatpush.bf16.xpose.msra.mxu0 0
        %469 = vmatpush.bf16.xpose.msra.mxu0 0
        %470 = vmatpush.bf16.xpose.msra.mxu0 0
        %471 = vmatpush.bf16.xpose.msra.mxu0 0
        %472 = vmatpush.bf16.xpose.msra.mxu0 0
        %473 = vmatpush.bf16.xpose.msra.mxu0 0
        %474 = vmatpush.bf16.xpose.msra.mxu0 0
        %475 = vmatpush.bf16.xpose.msra.mxu0 %v466
        %476 = vmatmul.bf16.gmra.mxu0 %v463
        %v477 = vpop.f32.mrf.mxu0
        %v478 = vadd.f32 0.0, %v477
        %v479 = vpop.f32.mrf.mxu0
        %480 = vdwg.mxu0
        %vm481 = vcmask 64512
        %v482 = vsel %vm481, %v478, -inf
        %483 = vmax.xlane.f32.xlu0 %v482
        %v484 = vpop.xlane.xlu0 %483
        %v485 = vsub.f32 %v478, %v484
        %v486 = vmul.f32 %v485, 1.442695
        %v487 = vpow.pop %v486
        %v488 = vsel %vm481, %v487, 0.0
        %489 = vadd.xlane.f32.xlu0 %v488
        %v490 = vpop.xlane.xlu0 %489
        %v491 = vlog2.pop %v490
        %v492 = vmul.f32 %v491, 0.6931472
        %v493 = vadd.f32 %v484, %v492
        %v494 = vld [vmem:[#allocation5] sm:$0x1]
        %v495 = vld [vmem:[%s403] sm:$0xff]
        %v496 = vmul.f32 %v495, %v493
        %vm497 = vcmask 7168
        %v498 = vsel %vm497, %v496, 0.0
        %v499 = vrot.slane %v498, 4
        %v500 = vadd.f32 %v498, %v499
        %v501 = vrot.slane %v500, 2
        %v502 = vadd.f32 %v500, %v501
        %v503 = vrot.slane %v502, 1
        %v504 = vadd.f32 %v502, %v503
        %v505 = vadd.f32 %v494, %v504
        %vm506 = vcmask 0
        %507 = vst.msk [vmem:[#allocation5] sm:$0x1] %vm506, %v505
        %v508 = vld [vmem:[%s399] sm:$0xff]
        %v509 = vld [vmem:[%s3] sm:$0x1]
        %510 = vset.pattern.permute.xlu0 0
        %511 = vperm.xlu0 %510, %v508
        %v512 = vpop.permute.xlu0 %511
        %v513 = vperm.slane %v509, 0
        %vm514 = vcmp.eq.s32.totalorder %v512, %v513
        %v515 = vld [vmem:[#allocation6] sm:$0x1]
        %v516 = vsel %vm514, %v478, 0.0
        %v517 = vsel %vm481, %v516, 0.0
        %518 = vadd.xlane.f32.xlu0 %v517
        %v519 = vpop.xlane.xlu0 %518
        %v520 = vrot.slane %v519, 4
        %v521 = vadd.f32 %v519, %v520
        %v522 = vrot.slane %v521, 2
        %v523 = vadd.f32 %v521, %v522
        %v524 = vrot.slane %v523, 1
        %v525 = vadd.f32 %v523, %v524
        %v526 = vadd.f32 %v515, %v525
        %527 = vst.msk [vmem:[#allocation6] sm:$0x1] %vm506, %v526
        %v528 = vrot.slane %v482, 4
        %v529 = vmax.f32 %v482, %v528
        %v530 = vrot.slane %v529, 2
        %v531 = vmax.f32 %v529, %v530
        %v532 = vrot.slane %v531, 1
        %v533 = vmax.f32 %v531, %v532
        %v534 = vld [vmem:[#allocation3] sm:$0x1]
        %v535 = vmax.f32 %v534, %v533
        %v536 = vrot.slane %v484, 4
        %v537 = vmax.f32 %v484, %v536
        %v538 = vrot.slane %v537, 2
        %v539 = vmax.f32 %v537, %v538
        %v540 = vrot.slane %v539, 1
        %v541 = vmax.f32 %v539, %v540
        %v542 = vsub.f32 %v484, %v541
        %v543 = vmul.f32 %v542, 1.442695
        %v544 = vpow.pop %v543
        %v545 = vsub.f32 %v541, %v535
        %v546 = vmin.f32 %v545, 60.0
        %v547 = vmul.f32 %v546, 1.442695
        %v548 = vpow.pop %v547
        %v549 = vmul.f32 %v487, %v544
        %v550 = vsel %vm481, %v549, 0.0
        %v551 = vrot.slane %v550, 4
        %v552 = vadd.f32 %v550, %v551
        %v553 = vrot.slane %v552, 2
        %v554 = vadd.f32 %v552, %v553
        %v555 = vrot.slane %v554, 1
        %v556 = vadd.f32 %v554, %v555
        %v557 = vmul.f32 %v556, %v548
        %v558 = vld [vmem:[#allocation4] sm:$0x1]
        %v559 = vsub.f32 %v534, %v535
        %v560 = vmul.f32 %v559, 1.442695
        %v561 = vpow.pop %v560
        %v562 = vmul.f32 %v558, %v561
        %v563 = vadd.f32 %v562, %v557
        %vm564 = vcmask 57344
        %565 = vst.msk [vmem:[#allocation4] sm:$0x1] %vm564, %v563
        %566 = vst.msk [vmem:[#allocation3] sm:$0x1] %vm564, %v535
        // Predicated region
        $region61: #{tpu_custom_call.1} parent=47 // pred_check
          %p567 = pneg %p408
        $region62: #{tpu_custom_call.1} parent=47 // pred_check_branch
          %569 = sbr.rel (%p567) target = $region64
        $region63: #{tpu_custom_call.1} parent=47 // pred_region
          %v570 = vld [vmem:[#allocation3] sm:$0x1]
          %v571 = vld [vmem:[#allocation4] sm:$0x1]
          %v572 = vmax.f32 %v571, 1.0
          %v573 = vlog2.pop %v572
          %v574 = vmul.f32 %v573, 0.6931472
          %v575 = vadd.f32 %v570, %v574
          %v576 = vld [vmem:[%s5] sm:$0x1]
          %v577 = vmul.f32 %v576, %v575
          %v578 = vsel %vm564, %v577, 0.0
          %579 = vadd.xlane.f32.xlu0 %v578
          %v580 = vpop.xlane.xlu0 %579
          %v581 = vld [vmem:[#allocation5] sm:$0x1]
          %v582 = vld [vmem:[#allocation6] sm:$0x1]
          %v583 = vsub.f32 %v581, %v582
          %v584 = vmul.f32 %v583, 0.125
          %v585 = vsub.f32 %v580, %v582
          %v586 = vmul.f32 %v585, 0.125
          %v587 = vadd.f32 %v584, %v586
          %588 = vst.msk [vmem:[%s406] sm:$0x1] %vm506, %v587
        $region64: #{tpu_custom_call.1} parent=47 // pred_fallthru
          _
        %p589 = scmp.lt.s32.totalorder %s29, 2
        %s590 = scalar_select %p589, %s29, 2
        %s591 = scalar_lea.vmem %s7, %s590
        // Predicated region
        $region65: #{tpu_custom_call.1} parent=47 // pred_check
          %p592 = pneg %p236
        $region66: #{tpu_custom_call.1} parent=47 // pred_check_branch
          %594 = sbr.rel (%p592) target = $region68
        $region67: #{tpu_custom_call.1} parent=47 // pred_region
          _
        $region68: #{tpu_custom_call.1} parent=47 // pred_fallthru
          _
      $region48: #{tpu_custom_call.1} parent=5 // pred_fallthru
        _
      %p595 = scmp.le.s32.totalorder 2, %s20
      // Predicated region
      $region69: #{tpu_custom_call.1} parent=5 // pred_check
        %p596 = pneg %p595
      $region70: #{tpu_custom_call.1} parent=5 // pred_check_branch
        %598 = sbr.rel (%p596) target = $region72
      $region71: #{tpu_custom_call.1} parent=5 // pred_region
        %s599 = ssub.s32 %s20, 2
        // Predicated region
        $region73: #{tpu_custom_call.1} parent=71 // pred_check
          %p600 = pneg %p242
        $region74: #{tpu_custom_call.1} parent=71 // pred_check_branch
          %602 = sbr.rel (%p600) target = $region76
        $region75: #{tpu_custom_call.1} parent=71 // pred_region
          %p603 = scmp.lt.s32.totalorder %s31, 2
          %s604 = scalar_select %p603, %s31, 2
          %s605 = scalar_lea.vmem %s7, %s604
        $region76: #{tpu_custom_call.1} parent=71 // pred_fallthru
          _
      $region72: #{tpu_custom_call.1} parent=5 // pred_fallthru
        _
    $region6: #{tpu_custom_call.1} parent=1 // loop_footer
      %s24 = sadd.s32 1, %s20
    $region7: #{tpu_custom_call.1} parent=1 // loop_footer_branch
      %19 = sbr.rel target = $region3
    $region8: #{tpu_custom_call.1} parent=1 // loop_exit
      _
    %606 = vsyncpa [#allocation9], 1
    %s607 = scalar_lea.sflag [#allocation9], 1
    %608 = vsyncpa %s607, 1
    %609 = vsyncpa [#allocation11], 1
    %s610 = scalar_lea.sflag [#allocation11], 1
    %611 = vsyncpa %s610, 1

</llo_original>
